<compile_context>
chip_gen: v7x
topology: tpu7x:2x2x1
jax: 0.10.0
libtpu: 0.0.40
codegen_flags: <defaults>
</compile_context>

<pallas_src>
import numpy as np
import jax
import jax.numpy as jnp
from jax.experimental import pallas as pl
from jax.experimental.pallas import tpu as pltpu


# ------------------------------- kernel -----------------------------------

def edge_var_kernel(pos_ref, d_ref, w_ref, gvar_ref, out_ref):
    pos = pos_ref[...]                                                    # (N, C)
    # end - start for every raw edge via one dense gather-difference matmul
    diff = jnp.dot(d_ref[...], pos, preferred_element_type=jnp.float32)   # (E, C)
    eu = jnp.sqrt(jnp.sum(diff * diff, axis=1, keepdims=True))            # (E, 1)
    ev = jnp.square(eu - 1.0)                                             # (E, 1)
    # scatter(reduce='mean') over graphs as a dense per-graph mean matmul
    gvar = jnp.dot(w_ref[...], ev, preferred_element_type=jnp.float32)    # (G, 1)
    gvar_ref[...] = gvar
    # default reduce=torch.mean over graphs
    out_ref[...] = jnp.sum(gvar, axis=0, keepdims=True) * (1.0 / gvar.shape[0])


def edge_var_forward(node_pos, diff_mat, mean_mat):
    """EdgeVar.forward. Returns (scalar mean over graphs, per-graph graph_var)."""
    n_graphs = mean_mat.shape[0]
    vmem = pl.BlockSpec(memory_space=pltpu.MemorySpace.VMEM)
    gvar, mean = pl.pallas_call(
        edge_var_kernel,
        out_shape=(jax.ShapeDtypeStruct((n_graphs, 1), jnp.float32),
                   jax.ShapeDtypeStruct((1, 1), jnp.float32)),
        in_specs=[vmem, vmem, vmem],
        out_specs=(vmem, vmem),
    )(node_pos, diff_mat, mean_mat)
    # reduce=torch.mean (default). With reduce=None the module would return gvar.
    return mean[0, 0], gvar[:, 0]


# ----------------- static graph-structure matrices (host) ------------------

def build_structure_matrices(raw_edge_index, node_batch, num_graphs):
    src = np.asarray(raw_edge_index[0])
    dst = np.asarray(raw_edge_index[1])
    nb = np.asarray(node_batch)
    n_nodes = nb.shape[0]
    n_edges = src.shape[0]

    # signed incidence matrix: (D @ pos)[e] = pos[dst[e]] - pos[src[e]]
    diff_mat = np.zeros((n_edges, n_nodes), np.float32)
    diff_mat[np.arange(n_edges), dst] += 1.0
    diff_mat[np.arange(n_edges), src] -= 1.0

    # per-graph mean matrix over edges; edge graph id = batch[src[e]]
    edge_graph = nb[src]
    member = (edge_graph[None, :] == np.arange(num_graphs)[:, None]).astype(np.float32)
    deg = np.maximum(member.sum(axis=1, keepdims=True), 1.0)
    mean_mat = member / deg                                              # (G, E)

    return jnp.asarray(diff_mat), jnp.asarray(mean_mat)


# ---------------------------- pure-JAX reference ---------------------------

def edge_var_reference(node_pos, raw_edge_index, node_batch, num_graphs):
    start = node_pos[raw_edge_index[0]]
    end = node_pos[raw_edge_index[1]]
    eu = jnp.sqrt(jnp.sum((end - start) ** 2, axis=1))
    ev = jnp.square(eu - 1.0)
    idx = node_batch[raw_edge_index[0]]
    sums = jnp.zeros((num_graphs,), jnp.float32).at[idx].add(ev)
    cnts = jnp.zeros((num_graphs,), jnp.float32).at[idx].add(1.0)
    gvar = sums / jnp.maximum(cnts, 1.0)
    return jnp.mean(gvar), gvar


# ----------------------------------- main -----------------------------------

if __name__ == "__main__":
    key = jax.random.PRNGKey(0)

    # Two small graphs batched PyG-style: 8-node bidirectional rings.
    nodes_per_graph, num_graphs = 8, 2
    n_nodes = nodes_per_graph * num_graphs
    src_list, dst_list = [], []
    for g in range(num_graphs):
        base = g * nodes_per_graph
        for i in range(nodes_per_graph):
            u, v = base + i, base + (i + 1) % nodes_per_graph
            src_list += [u, v]
            dst_list += [v, u]
    raw_edge_index = jnp.array([src_list, dst_list], dtype=jnp.int32)     # (2, 32)
    node_batch = jnp.array([g for g in range(num_graphs)
                            for _ in range(nodes_per_graph)], dtype=jnp.int32)  # (16,)

    node_pos = jax.random.normal(key, (n_nodes, 2), jnp.float32)          # (16, 2)

    diff_mat, mean_mat = build_structure_matrices(raw_edge_index, node_batch, num_graphs)

    fwd = jax.jit(edge_var_forward)
    out, graph_var = fwd(node_pos, diff_mat, mean_mat)
    jax.block_until_ready((out, graph_var))

    ref_out, ref_gvar = edge_var_reference(node_pos, raw_edge_index, node_batch, num_graphs)
    np.testing.assert_allclose(np.asarray(out), np.asarray(ref_out), rtol=1e-4, atol=1e-5)
    np.testing.assert_allclose(np.asarray(graph_var), np.asarray(ref_gvar), rtol=1e-4, atol=1e-5)
    assert out.shape == () and out.dtype == jnp.float32
    assert graph_var.shape == (num_graphs,)
    print("KERNEL_OK")
</pallas_src>

<mosaic_0001>
module attributes {stable_mosaic.version = 11 : i64} {
  func.func @edge_var_kernel(%arg0: memref<16x2xf32, #tpu.memory_space<vmem>>, %arg1: memref<32x16xf32, #tpu.memory_space<vmem>>, %arg2: memref<2x32xf32, #tpu.memory_space<vmem>>, %arg3: memref<2x1xf32, #tpu.memory_space<vmem>>, %arg4: memref<1x1xf32, #tpu.memory_space<vmem>>) attributes {dimension_semantics = [], scalar_prefetch = 0 : i64, scratch_operands = 0 : i64, tpu.core_type = #tpu.core_type<tc>} {
    %c0 = arith.constant 0 : index
    %c0_0 = arith.constant 0 : index
    %0 = vector.load %arg0[%c0, %c0_0] : memref<16x2xf32, #tpu.memory_space<vmem>>, vector<16x2xf32>
    %c0_1 = arith.constant 0 : index
    %c0_2 = arith.constant 0 : index
    %1 = vector.load %arg1[%c0_1, %c0_2] : memref<32x16xf32, #tpu.memory_space<vmem>>, vector<32x16xf32>
    %cst = arith.constant dense<0.000000e+00> : vector<32x2xf32>
    %2 = tpu.matmul %1, %0, %cst {dimension_numbers = #tpu.dot_dimension_numbers<[1], [0], [0], [1], [0, 0, 1, 1], [], []>} : vector<32x16xf32>, vector<16x2xf32>, vector<32x2xf32> -> vector<32x2xf32>
    %3 = arith.mulf %2, %2 : vector<32x2xf32>
    %cst_3 = arith.constant dense<0.000000e+00> : vector<32xf32>
    %4 = vector.multi_reduction <add>, %3, %cst_3 [1] : vector<32x2xf32> to vector<32xf32>
    %5 = vector.shape_cast %4 : vector<32xf32> to vector<32x1xf32>
    %6 = math.sqrt %5 : vector<32x1xf32>
    %cst_4 = arith.constant 1.000000e+00 : f32
    %7 = vector.broadcast %cst_4 : f32 to vector<32x1xf32>
    %8 = arith.subf %6, %7 : vector<32x1xf32>
    %9 = arith.mulf %8, %8 : vector<32x1xf32>
    %c0_5 = arith.constant 0 : index
    %c0_6 = arith.constant 0 : index
    %10 = vector.load %arg2[%c0_5, %c0_6] : memref<2x32xf32, #tpu.memory_space<vmem>>, vector<2x32xf32>
    %cst_7 = arith.constant dense<0.000000e+00> : vector<2x1xf32>
    %11 = tpu.matmul %10, %9, %cst_7 {dimension_numbers = #tpu.dot_dimension_numbers<[1], [0], [0], [1], [0, 0, 1, 1], [], []>} : vector<2x32xf32>, vector<32x1xf32>, vector<2x1xf32> -> vector<2x1xf32>
    %c0_8 = arith.constant 0 : index
    %c0_9 = arith.constant 0 : index
    %12 = vector.load %arg3[%c0_8, %c0_9] : memref<2x1xf32, #tpu.memory_space<vmem>>, vector<2x1xf32>
    tpu.vector_store %arg3[%c0_8, %c0_9], %11 {strides = array<i32>} : memref<2x1xf32, #tpu.memory_space<vmem>>, vector<2x1xf32>,
    %cst_10 = arith.constant dense<0.000000e+00> : vector<1xf32>
    %13 = vector.multi_reduction <add>, %11, %cst_10 [0] : vector<2x1xf32> to vector<1xf32>
    %14 = vector.shape_cast %13 : vector<1xf32> to vector<1x1xf32>
    %cst_11 = arith.constant 5.000000e-01 : f32
    %15 = vector.broadcast %cst_11 : f32 to vector<1x1xf32>
    %16 = arith.mulf %14, %15 : vector<1x1xf32>
    %c0_12 = arith.constant 0 : index
    %c0_13 = arith.constant 0 : index
    %17 = vector.load %arg4[%c0_12, %c0_13] : memref<1x1xf32, #tpu.memory_space<vmem>>, vector<1x1xf32>
    tpu.vector_store %arg4[%c0_12, %c0_13], %16 {strides = array<i32>} : memref<1x1xf32, #tpu.memory_space<vmem>>, vector<1x1xf32>,
    return
  }
}

</mosaic_0001>

<llo_original>
// kernel: edge_var_forward.1
$region0: #{edge_var_forward.1}
  #allocation0 [shape = 'u32[]', space=smem, size = 0x4, offset = 0x4, fixed_abs, tag = 'smem constant byte address 0x4 - core index']
  #allocation1 [shape = 'u32[144,128]{1,0:T(1,128)}', space=vmem, size = 0x12000, scoped, tag = 'internal scratch']
  %s0 = inlined_call_operand.vmem [shape: f32[16,2], index: 0, kind: input, shape index: {}]
  %s1 = inlined_call_operand.vmem [shape: f32[32,16], index: 1, kind: input, shape index: {}]
  %s2 = inlined_call_operand.vmem [shape: f32[2,32], index: 2, kind: input, shape index: {}]
  %s3 = inlined_call_operand.vmem [shape: f32[2,1], index: 3, kind: output, shape index: {0}]
  %s4 = inlined_call_operand.hbm [shape: f32[1,1], index: 4, kind: output, shape index: {1}]
  %5 = xla_tuple %s3, %s4
  %s6 = sld [smem:[#allocation0]]
  $region30: #{edge_var_forward.1} parent=0
    _
  %s8 = ssub.s32 1, %s6
  %s9 = scalar_select 0, %s8, %s6
  $region1: #{edge_var_forward.1} parent=0
    #allocation2 [shape = 'u8[512]{0}', space=vmem, size = 0x400, scoped, tag = 'output window, operand 1, single buffered']
    #allocation3 [shape = 's32[1]{0}', space=sflag, size = 0x4, scoped, tag = 'scoped memory for edge_var_forward.1']
    %10 = vsyncpa [#allocation3], 0
    // Predicated region
    $region2: #{edge_var_forward.1} parent=1 // pred_check
      _
    $region3: #{edge_var_forward.1} parent=1 // pred_check_branch
      %12 = sbr.rel (0) target = $region5
    $region4: #{edge_var_forward.1} parent=1 // pred_region
      _
    $region5: #{edge_var_forward.1} parent=1 // pred_fallthru
      _
    // Predicated region
    $region6: #{edge_var_forward.1} parent=1 // pred_check
      _
    $region7: #{edge_var_forward.1} parent=1 // pred_check_branch
      %14 = sbr.rel (0) target = $region9
    $region8: #{edge_var_forward.1} parent=1 // pred_region
      _
    $region9: #{edge_var_forward.1} parent=1 // pred_fallthru
      _
    // Predicated region
    $region10: #{edge_var_forward.1} parent=1 // pred_check
      _
    $region11: #{edge_var_forward.1} parent=1 // pred_check_branch
      %16 = sbr.rel (0) target = $region13
    $region12: #{edge_var_forward.1} parent=1 // pred_region
      _
    $region13: #{edge_var_forward.1} parent=1 // pred_fallthru
      _
    %v17 = vld [vmem:[%s0] sm:$0xff]
    %v18 = vld [vmem:[%s0 + $0x8] sm:$0xff]
    %v19 = vld [vmem:[%s1] sm:$0xff]
    %v20 = vld [vmem:[%s1 + $0x8] sm:$0xff]
    %v21 = vld [vmem:[%s1 + $0x10] sm:$0xff]
    %v22 = vld [vmem:[%s1 + $0x18] sm:$0xff]
    %vm23 = vcmask 130048
    %v25 = vsel %vm23, %v19, 0
    %v28 = vsel %vm23, %v20, 0
    %v31 = vsel %vm23, %v21, 0
    %v34 = vsel %vm23, %v22, 0
    %36 = vmatprep.subr.mxu0 0.0
    %37 = vmatpush1.msra.mxu0 %v17
    %38 = vmatprep.subr.mxu0 0.0
    %39 = vmatpush1.msra.mxu0 %v18
    %40 = vmatprep.subr.mxu0 0.0
    %41 = vmatpush1.msra.mxu0 0.0
    %42 = vmatprep.subr.mxu0 0.0
    %43 = vmatpush1.msra.mxu0 0.0
    %44 = vmatprep.subr.mxu0 0.0
    %45 = vmatpush1.msra.mxu0 0.0
    %46 = vmatprep.subr.mxu0 0.0
    %47 = vmatpush1.msra.mxu0 0.0
    %48 = vmatprep.subr.mxu0 0.0
    %49 = vmatpush1.msra.mxu0 0.0
    %50 = vmatprep.subr.mxu0 0.0
    %51 = vmatpush1.msra.mxu0 0.0
    %52 = vmatprep.subr.mxu0 0.0
    %53 = vmatpush1.msra.mxu0 0.0
    %54 = vmatprep.subr.mxu0 0.0
    %55 = vmatpush1.msra.mxu0 0.0
    %56 = vmatprep.subr.mxu0 0.0
    %57 = vmatpush1.msra.mxu0 0.0
    %58 = vmatprep.subr.mxu0 0.0
    %59 = vmatpush1.msra.mxu0 0.0
    %60 = vmatprep.subr.mxu0 0.0
    %61 = vmatpush1.msra.mxu0 0.0
    %62 = vmatprep.subr.mxu0 0.0
    %63 = vmatpush1.msra.mxu0 0.0
    %64 = vmatprep.subr.mxu0 0.0
    %65 = vmatpush1.msra.mxu0 0.0
    %66 = vmatprep.subr.mxu0 0.0
    %67 = vmatpush1.msra.mxu0 0.0
    %68 = vmatprep.subr.mxu0 0.0
    %69 = vmatpush1.msra.mxu0 0.0
    %70 = vmatprep.subr.mxu0 0.0
    %71 = vmatpush1.msra.mxu0 0.0
    %72 = vmatprep.subr.mxu0 0.0
    %73 = vmatpush1.msra.mxu0 0.0
    %74 = vmatprep.subr.mxu0 0.0
    %75 = vmatpush1.msra.mxu0 0.0
    %76 = vmatprep.subr.mxu0 0.0
    %77 = vmatpush1.msra.mxu0 0.0
    %78 = vmatprep.subr.mxu0 0.0
    %79 = vmatpush1.msra.mxu0 0.0
    %80 = vmatprep.subr.mxu0 0.0
    %81 = vmatpush1.msra.mxu0 0.0
    %82 = vmatprep.subr.mxu0 0.0
    %83 = vmatpush1.msra.mxu0 0.0
    %84 = vmatprep.subr.mxu0 0.0
    %85 = vmatpush1.msra.mxu0 0.0
    %86 = vmatprep.subr.mxu0 0.0
    %87 = vmatpush1.msra.mxu0 0.0
    %88 = vmatprep.subr.mxu0 0.0
    %89 = vmatpush1.msra.mxu0 0.0
    %90 = vmatprep.subr.mxu0 0.0
    %91 = vmatpush1.msra.mxu0 0.0
    %92 = vmatprep.subr.mxu0 0.0
    %93 = vmatpush1.msra.mxu0 0.0
    %94 = vmatprep.subr.mxu0 0.0
    %95 = vmatpush1.msra.mxu0 0.0
    %96 = vmatprep.subr.mxu0 0.0
    %97 = vmatpush1.msra.mxu0 0.0
    %98 = vmatprep.subr.mxu0 0.0
    %99 = vmatpush1.msra.mxu0 0.0
    %100 = vmatprep.mubr.f32.mxu0 0.0
    %101 = vmatmul.mubr.f32.gmra.mrb[0].mxu0 %v25
    %v102 = vpop.f32.mrb[0].mxu0
    %v103 = vadd.f32 0.0, %v102
    %v104 = vpop.f32.mrb[0].mxu0
    %105 = vmatprep.mubr.f32.mxu0 0.0
    %106 = vmatmul.mubr.f32.gmra.mrb[0].mxu0 %v28
    %v107 = vpop.f32.mrb[0].mxu0
    %v108 = vadd.f32 0.0, %v107
    %v109 = vpop.f32.mrb[0].mxu0
    %110 = vmatprep.mubr.f32.mxu0 0.0
    %111 = vmatmul.mubr.f32.gmra.mrb[0].mxu0 %v31
    %v112 = vpop.f32.mrb[0].mxu0
    %v113 = vadd.f32 0.0, %v112
    %v114 = vpop.f32.mrb[0].mxu0
    %115 = vmatprep.mubr.f32.mxu0 0.0
    %116 = vmatmul.mubr.f32.gmra.mrb[0].mxu0 %v34
    %v117 = vpop.f32.mrb[0].mxu0
    %v118 = vadd.f32 0.0, %v117
    %v119 = vpop.f32.mrb[0].mxu0
    %120 = vdwg.mxu0
    %v121 = vmul.f32 %v103, %v103
    %v122 = vmul.f32 %v108, %v108
    %v123 = vmul.f32 %v113, %v113
    %v124 = vmul.f32 %v118, %v118
    %vm125 = vcmask 15360
    %v126 = vsel %vm125, %v121, 0.0
    %127 = vadd.xlane.f32.xlu0 %v126
    %v128 = vpop.xlane.xlu0 %127
    %v129 = vsel %vm125, %v122, 0.0
    %130 = vadd.xlane.f32.xlu0 %v129
    %v131 = vpop.xlane.xlu0 %130
    %v132 = vsel %vm125, %v123, 0.0
    %133 = vadd.xlane.f32.xlu0 %v132
    %v134 = vpop.xlane.xlu0 %133
    %v135 = vsel %vm125, %v124, 0.0
    %136 = vadd.xlane.f32.xlu0 %v135
    %v137 = vpop.xlane.xlu0 %136
    %v138 = vrsqrt.pop %v128
    %v139 = vmul.f32 %v128, %v138
    %vm140 = vcmp.eq.f32.partialorder %v128, inf
    %v141 = vsel %vm140, %v128, %v139
    %vm142 = vcmp.eq.f32.partialorder %v128, 0.0
    %v143 = vand.u32 %v128, 2147483648
    %v144 = vsel %vm142, %v143, %v141
    %v145 = vrsqrt.pop %v131
    %v146 = vmul.f32 %v131, %v145
    %vm147 = vcmp.eq.f32.partialorder %v131, inf
    %v148 = vsel %vm147, %v131, %v146
    %vm149 = vcmp.eq.f32.partialorder %v131, 0.0
    %v150 = vand.u32 %v131, 2147483648
    %v151 = vsel %vm149, %v150, %v148
    %v152 = vrsqrt.pop %v134
    %v153 = vmul.f32 %v134, %v152
    %vm154 = vcmp.eq.f32.partialorder %v134, inf
    %v155 = vsel %vm154, %v134, %v153
    %vm156 = vcmp.eq.f32.partialorder %v134, 0.0
    %v157 = vand.u32 %v134, 2147483648
    %v158 = vsel %vm156, %v157, %v155
    %v159 = vrsqrt.pop %v137
    %v160 = vmul.f32 %v137, %v159
    %vm161 = vcmp.eq.f32.partialorder %v137, inf
    %v162 = vsel %vm161, %v137, %v160
    %vm163 = vcmp.eq.f32.partialorder %v137, 0.0
    %v164 = vand.u32 %v137, 2147483648
    %v165 = vsel %vm163, %v164, %v162
    %v166 = vsub.f32 %v144, 1.0
    %v167 = vsub.f32 %v151, 1.0
    %v168 = vsub.f32 %v158, 1.0
    %v169 = vsub.f32 %v165, 1.0
    %v170 = vmul.f32 %v166, %v166
    %v171 = vmul.f32 %v167, %v167
    %v172 = vmul.f32 %v168, %v168
    %v173 = vmul.f32 %v169, %v169
    %v174 = vld [vmem:[%s2] sm:$0x3]
    %vm175 = vcmask 261120
    %v177 = vsel %vm175, %v174, 0
    %179 = vmatprep.subr.mxu0 0.0
    %180 = vmatpush1.msra.mxu0 %v170
    %181 = vmatprep.subr.mxu0 0.0
    %182 = vmatpush1.msra.mxu0 %v171
    %183 = vmatprep.subr.mxu0 0.0
    %184 = vmatpush1.msra.mxu0 %v172
    %185 = vmatprep.subr.mxu0 0.0
    %186 = vmatpush1.msra.mxu0 %v173
    %187 = vmatprep.subr.mxu0 0.0
    %188 = vmatpush1.msra.mxu0 0.0
    %189 = vmatprep.subr.mxu0 0.0
    %190 = vmatpush1.msra.mxu0 0.0
    %191 = vmatprep.subr.mxu0 0.0
    %192 = vmatpush1.msra.mxu0 0.0
    %193 = vmatprep.subr.mxu0 0.0
    %194 = vmatpush1.msra.mxu0 0.0
    %195 = vmatprep.subr.mxu0 0.0
    %196 = vmatpush1.msra.mxu0 0.0
    %197 = vmatprep.subr.mxu0 0.0
    %198 = vmatpush1.msra.mxu0 0.0
    %199 = vmatprep.subr.mxu0 0.0
    %200 = vmatpush1.msra.mxu0 0.0
    %201 = vmatprep.subr.mxu0 0.0
    %202 = vmatpush1.msra.mxu0 0.0
    %203 = vmatprep.subr.mxu0 0.0
    %204 = vmatpush1.msra.mxu0 0.0
    %205 = vmatprep.subr.mxu0 0.0
    %206 = vmatpush1.msra.mxu0 0.0
    %207 = vmatprep.subr.mxu0 0.0
    %208 = vmatpush1.msra.mxu0 0.0
    %209 = vmatprep.subr.mxu0 0.0
    %210 = vmatpush1.msra.mxu0 0.0
    %211 = vmatprep.subr.mxu0 0.0
    %212 = vmatpush1.msra.mxu0 0.0
    %213 = vmatprep.subr.mxu0 0.0
    %214 = vmatpush1.msra.mxu0 0.0
    %215 = vmatprep.subr.mxu0 0.0
    %216 = vmatpush1.msra.mxu0 0.0
    %217 = vmatprep.subr.mxu0 0.0
    %218 = vmatpush1.msra.mxu0 0.0
    %219 = vmatprep.subr.mxu0 0.0
    %220 = vmatpush1.msra.mxu0 0.0
    %221 = vmatprep.subr.mxu0 0.0
    %222 = vmatpush1.msra.mxu0 0.0
    %223 = vmatprep.subr.mxu0 0.0
    %224 = vmatpush1.msra.mxu0 0.0
    %225 = vmatprep.subr.mxu0 0.0
    %226 = vmatpush1.msra.mxu0 0.0
    %227 = vmatprep.subr.mxu0 0.0
    %228 = vmatpush1.msra.mxu0 0.0
    %229 = vmatprep.subr.mxu0 0.0
    %230 = vmatpush1.msra.mxu0 0.0
    %231 = vmatprep.subr.mxu0 0.0
    %232 = vmatpush1.msra.mxu0 0.0
    %233 = vmatprep.subr.mxu0 0.0
    %234 = vmatpush1.msra.mxu0 0.0
    %235 = vmatprep.subr.mxu0 0.0
    %236 = vmatpush1.msra.mxu0 0.0
    %237 = vmatprep.subr.mxu0 0.0
    %238 = vmatpush1.msra.mxu0 0.0
    %239 = vmatprep.subr.mxu0 0.0
    %240 = vmatpush1.msra.mxu0 0.0
    %241 = vmatprep.subr.mxu0 0.0
    %242 = vmatpush1.msra.mxu0 0.0
    %243 = vmatprep.mubr.f32.mxu0 0.0
    %244 = vmatmul.mubr.f32.gmra.mrb[0].mxu0 %v177
    %v245 = vpop.f32.mrb[0].mxu0
    %v246 = vadd.f32 0.0, %v245
    %v247 = vpop.f32.mrb[0].mxu0
    %248 = vdwg.mxu0
    %vm249 = vcmask 1024
    %250 = vst.msk [vmem:[%s3] sm:$0x3] %vm249, %v246
    %v251 = vsel %vm249, %v246, 0.0
    %v252 = vrot.slane %v251, 4
    %v253 = vadd.f32 %v251, %v252
    %v254 = vrot.slane %v253, 2
    %v255 = vadd.f32 %v253, %v254
    %v256 = vrot.slane %v255, 1
    %v257 = vadd.f32 %v255, %v256
    %v258 = vmul.f32 %v257, 0.5
    %vm259 = vcmask 0
    %260 = vst.msk [vmem:[#allocation2] sm:$0x1] %vm259, %v258
    // Predicated region
    $region14: #{edge_var_forward.1} parent=1 // pred_check
      _
    $region15: #{edge_var_forward.1} parent=1 // pred_check_branch
      %262 = sbr.rel (0) target = $region17
    $region16: #{edge_var_forward.1} parent=1 // pred_region
      _
    $region17: #{edge_var_forward.1} parent=1 // pred_fallthru
      _
    // Predicated region
    $region18: #{edge_var_forward.1} parent=1 // pred_check
      _
    $region19: #{edge_var_forward.1} parent=1 // pred_check_branch
      %264 = sbr.rel (0) target = $region21
    $region20: #{edge_var_forward.1} parent=1 // pred_region
      %s266 = ssub.s32 16, 16
      %267 = vsyncadd [#allocation3], %s266
      %s269 = sshll.u32 [#allocation2], 4
      %s270 = int_to_ptr.vmem [resolvable:$true] %s269
      %272 = dma.vmem_to_hbm [thread:$0]  %s270, 16, %s4, [#allocation3]
    $region21: #{edge_var_forward.1} parent=1 // pred_fallthru
      _
    // Predicated region
    $region22: #{edge_var_forward.1} parent=1 // pred_check
      _
    $region23: #{edge_var_forward.1} parent=1 // pred_check_branch
      %274 = sbr.rel (0) target = $region25
    $region24: #{edge_var_forward.1} parent=1 // pred_region
      _
    $region25: #{edge_var_forward.1} parent=1 // pred_fallthru
      _
    // Predicated region
    $region26: #{edge_var_forward.1} parent=1 // pred_check
      _
    $region27: #{edge_var_forward.1} parent=1 // pred_check_branch
      %276 = sbr.rel (0) target = $region29
    $region28: #{edge_var_forward.1} parent=1 // pred_region
      %277 = dma.done [#allocation3], 16
    $region29: #{edge_var_forward.1} parent=1 // pred_fallthru
      _
    %278 = vsyncpa [#allocation3], 1

</llo_original>
